<compile_context>
chip_gen: v6e
topology: v6e:2x2x1
jax: 0.10.0
libtpu: 0.0.40
codegen_flags: <defaults>
</compile_context>

<pallas_src>
import functools

import jax
import jax.numpy as jnp
from jax.experimental import pallas as pl
from jax.experimental.pallas import tpu as pltpu


def _tree_sum(parts):
    """Pairwise (log-depth) sum of a list of equal-shaped arrays (VPU adds)."""
    while len(parts) > 1:
        merged = [parts[i] + parts[i + 1] for i in range(0, len(parts) - 1, 2)]
        if len(parts) % 2:
            merged.append(parts[-1])
        parts = merged
    return parts[0]


def _sse_block_kernel(pred_ref, lab_ref, out_ref):
    """Partial sum of squared errors for one (tile_rows, tile_cols) block.

    Writes a (1, out_w) lane-dense partial; all grid steps are independent,
    so there is no accumulator carry and both grid axes can be 'parallel'.
    """
    d = pred_ref[...].astype(jnp.float32) - lab_ref[...].astype(jnp.float32)
    sq = d * d
    tr, tc = sq.shape

    # Fold sublane groups of 8 (static aligned slices + elementwise adds; VPU only).
    if tr > 8 and tr % 8 == 0:
        sq = _tree_sum([sq[g * 8:(g + 1) * 8, :] for g in range(tr // 8)])   # (8, tc)

    # Fold lane groups of 128 (static aligned slices + elementwise adds; VPU only).
    if tc > 128 and tc % 128 == 0:
        sq = _tree_sum([sq[:, k * 128:(k + 1) * 128] for k in range(tc // 128)])  # (r, 128)

    # Single small cross-sublane reduce per block -> lane-dense partial.
    out_ref[...] = jnp.sum(sq, axis=0, keepdims=True)                        # (1, out_w)


def _pick_row_tile(rows, sublane, cap=1024):
    """Row tile: full extent for small batches, else a sublane-aligned divisor <= cap."""
    if rows <= cap:
        return rows
    start = cap - (cap % sublane)
    for t in range(start, 0, -sublane):
        if rows % t == 0:
            return t
    for t in range(cap, 0, -1):
        if rows % t == 0:
            return t
    return rows


def _pick_col_tile(cols, tile_rows, itemsize, budget_bytes=2 * 1024 * 1024):
    """Largest 128-multiple divisor of `cols` keeping one input block <= budget."""
    if cols % 128 != 0:
        # Rare non-128-divisible width: use the full extent (single column block).
        return cols
    max_cols = max(128, budget_bytes // max(1, tile_rows * itemsize))
    max_mult = max(1, min(cols, max_cols) // 128)
    for k in range(max_mult, 0, -1):
        if cols % (128 * k) == 0:
            return 128 * k
    return cols


@functools.partial(jax.jit, static_argnames=("reduction",))
def loss_function(prediction, label0, label1, *, reduction="mean"):
    """prediction: (B, N, 2); label0/label1: (B, N). Returns a scalar loss."""
    B, N, C = prediction.shape
    assert C == 2, "prediction last dim must be 2"
    assert label0.shape == (B, N) and label1.shape == (B, N)

    # Interleave label channels exactly like prediction's row-major layout and
    # fold channels into the lane dimension (prediction reshape is free).
    # Kept in native dtype -- no wrapper-side f32 upcast (perf feedback #2).
    labels = jnp.stack([label0, label1], axis=-1)            # (B, N, 2)
    L = 2 * N
    pred2d = prediction.reshape(B, L)                        # (B, 2N) lane-dense
    lab2d = labels.reshape(B, L)

    itemsize = max(jnp.dtype(pred2d.dtype).itemsize,
                   jnp.dtype(lab2d.dtype).itemsize)
    sublane = 8 * max(1, 4 // itemsize)                      # 8 (f32) / 16 (bf16) / 32 (8-bit)
    tile_rows = _pick_row_tile(B, sublane)
    tile_cols = _pick_col_tile(L, tile_rows, itemsize)
    num_row_blocks = B // tile_rows
    num_col_blocks = L // tile_cols
    out_w = 128 if tile_cols % 128 == 0 else tile_cols

    if reduction == "mean":
        scale = 1.0 / float(B * N)   # each MSE term averages over B*N elements
    elif reduction == "sum":
        scale = 1.0
    else:
        # TODO(synk): reduction='none' (per-element output) has a different
        # output shape and is not implemented; the module default is 'mean'.
        raise NotImplementedError(f"reduction={reduction!r}")

    in_block = pl.BlockSpec((tile_rows, tile_cols), lambda i, j: (i, j))

    partials = pl.pallas_call(
        _sse_block_kernel,
        out_shape=jax.ShapeDtypeStruct(
            (num_row_blocks, num_col_blocks * out_w), jnp.float32),
        grid=(num_row_blocks, num_col_blocks),
        in_specs=[in_block, in_block],
        out_specs=pl.BlockSpec((1, out_w), lambda i, j: (i, j)),
        compiler_params=pltpu.CompilerParams(
            # Fully independent blocks -> both axes parallel (v7x megacore).
            dimension_semantics=("parallel", "parallel"),
            # Explicit scoped-VMEM limit (v5e default is only 16 MiB); block
            # budget keeps 2 inputs x 2 buffers ~= 8 MiB, well under this.
            vmem_limit_bytes=32 * 1024 * 1024,
            # Let XLA fuse the wrapper-side label stack/reshape into the input.
            allow_input_fusion=[True, True],
        ),
    )(pred2d, lab2d)

    # Tiny final reduction + mean scaling on the (R, C*128) partial array.
    return jnp.sum(partials) * scale


def reference_loss(prediction, label0, label1, reduction="mean"):
    """Plain-JAX reference mirroring the PyTorch module."""
    d0 = prediction[:, :, 0].astype(jnp.float32) - label0.astype(jnp.float32)
    d1 = prediction[:, :, 1].astype(jnp.float32) - label1.astype(jnp.float32)
    if reduction == "mean":
        return jnp.mean(d0 * d0) + jnp.mean(d1 * d1)
    return jnp.sum(d0 * d0) + jnp.sum(d1 * d1)


if __name__ == "__main__":
    key = jax.random.PRNGKey(0)
    kp, k0, k1 = jax.random.split(key, 3)

    B, N = 8, 256  # batch of samples, points per sample, 2 displacement channels
    prediction = jax.random.normal(kp, (B, N, 2), jnp.float32)
    label0 = jax.random.normal(k0, (B, N), jnp.float32)
    label1 = jax.random.normal(k1, (B, N), jnp.float32)

    out = jax.block_until_ready(loss_function(prediction, label0, label1))
    ref = reference_loss(prediction, label0, label1)
    assert out.shape == ()
    assert out.dtype == jnp.float32
    assert jnp.allclose(out, ref, atol=1e-5, rtol=1e-5), "mean-reduction mismatch"

    out_sum = jax.block_until_ready(
        loss_function(prediction, label0, label1, reduction="sum"))
    ref_sum = reference_loss(prediction, label0, label1, reduction="sum")
    assert jnp.allclose(out_sum, ref_sum, atol=1e-3, rtol=1e-5), "sum-reduction mismatch"

    print("KERNEL_OK")
</pallas_src>

<mosaic_0001>
module attributes {stable_mosaic.version = 11 : i64} {
  func.func @_sse_block_kernel(%arg0: i32, %arg1: i32, %arg2: memref<8x512xf32, #tpu.memory_space<vmem>>, %arg3: memref<8x512xf32, #tpu.memory_space<vmem>>, %arg4: memref<1x128xf32, #tpu.memory_space<vmem>>) attributes {dimension_semantics = [#tpu.dimension_semantics<parallel>, #tpu.dimension_semantics<parallel>], iteration_bounds = array<i64: 1, 1>, scalar_prefetch = 0 : i64, scratch_operands = 0 : i64, tpu.core_type = #tpu.core_type<tc>, window_params = [{transform_indices = @transform_0, window_bounds = array<i64: 8, 512>}, {transform_indices = @transform_1, window_bounds = array<i64: 8, 512>}, {transform_indices = @transform_2, window_bounds = array<i64: 1, 128>}]} {
    %c0 = arith.constant 0 : index
    %c0_0 = arith.constant 0 : index
    %0 = vector.load %arg2[%c0, %c0_0] : memref<8x512xf32, #tpu.memory_space<vmem>>, vector<8x512xf32>
    %c0_1 = arith.constant 0 : index
    %c0_2 = arith.constant 0 : index
    %1 = vector.load %arg3[%c0_1, %c0_2] : memref<8x512xf32, #tpu.memory_space<vmem>>, vector<8x512xf32>
    %2 = arith.subf %0, %1 : vector<8x512xf32>
    %3 = arith.mulf %2, %2 : vector<8x512xf32>
    %4 = vector.extract_strided_slice %3 {offsets = [0, 0], sizes = [8, 128], strides = [1, 1]} : vector<8x512xf32> to vector<8x128xf32>
    %5 = vector.extract_strided_slice %3 {offsets = [0, 128], sizes = [8, 128], strides = [1, 1]} : vector<8x512xf32> to vector<8x128xf32>
    %6 = vector.extract_strided_slice %3 {offsets = [0, 256], sizes = [8, 128], strides = [1, 1]} : vector<8x512xf32> to vector<8x128xf32>
    %7 = vector.extract_strided_slice %3 {offsets = [0, 384], sizes = [8, 128], strides = [1, 1]} : vector<8x512xf32> to vector<8x128xf32>
    %8 = arith.addf %4, %5 : vector<8x128xf32>
    %9 = arith.addf %6, %7 : vector<8x128xf32>
    %10 = arith.addf %8, %9 : vector<8x128xf32>
    %cst = arith.constant dense<0.000000e+00> : vector<128xf32>
    %11 = vector.multi_reduction <add>, %10, %cst [0] : vector<8x128xf32> to vector<128xf32>
    %12 = vector.shape_cast %11 : vector<128xf32> to vector<1x128xf32>
    %c0_3 = arith.constant 0 : index
    %c0_4 = arith.constant 0 : index
    %13 = vector.load %arg4[%c0_3, %c0_4] : memref<1x128xf32, #tpu.memory_space<vmem>>, vector<1x128xf32>
    tpu.vector_store %arg4[%c0_3, %c0_4], %12 {strides = array<i32>} : memref<1x128xf32, #tpu.memory_space<vmem>>, vector<1x128xf32>,
    return
  }
  func.func @transform_0(%arg0: i32, %arg1: i32) -> (i32, i32) {
    %c0_i32 = arith.constant 0 : i32
    return %arg0, %arg1 : i32, i32
  }
  func.func @transform_1(%arg0: i32, %arg1: i32) -> (i32, i32) {
    %c0_i32 = arith.constant 0 : i32
    return %arg0, %arg1 : i32, i32
  }
  func.func @transform_2(%arg0: i32, %arg1: i32) -> (i32, i32) {
    %c0_i32 = arith.constant 0 : i32
    return %arg0, %arg1 : i32, i32
  }
}

</mosaic_0001>

<llo_original>
// kernel: loss_function.1
$region0: #{loss_function.1}
  #allocation0 [shape = 'u32[]', space=smem, size = 0x4, offset = 0x4, fixed_abs, tag = 'smem constant byte address 0x4 - core index']
  #allocation1 [shape = 'u32[144,128]{1,0:T(1,128)}', space=vmem, size = 0x12000, scoped, tag = 'internal scratch']
  %s0 = inlined_call_operand.vmem [shape: f32[8,512], index: 0, kind: input, shape index: {}]
  %s1 = inlined_call_operand.vmem [shape: f32[8,512], index: 1, kind: input, shape index: {}]
  %s2 = inlined_call_operand.vmem [shape: f32[1,128], index: 2, kind: output, shape index: {}]
  %s3 = sld [smem:[#allocation0]]
  $region18: #{loss_function.1} parent=0
    _
  %s5 = ssub.s32 1, %s3
  %s6 = scalar_select 0, %s5, %s3
  // Predicated region
  $region2: #{loss_function.1} parent=0 // pred_check
    _
  $region3: #{loss_function.1} parent=0 // pred_check_branch
    %8 = sbr.rel (0) target = $region5
  $region4: #{loss_function.1} parent=0 // pred_region
    _
  $region5: #{loss_function.1} parent=0 // pred_fallthru
    _
  // Predicated region
  $region6: #{loss_function.1} parent=0 // pred_check
    _
  $region7: #{loss_function.1} parent=0 // pred_check_branch
    %10 = sbr.rel (0) target = $region9
  $region8: #{loss_function.1} parent=0 // pred_region
    _
  $region9: #{loss_function.1} parent=0 // pred_fallthru
    _
  %v11 = vld [vmem:[%s0] sm:$0xff]
  %v12 = vld [vmem:[%s0 + $0x8] sm:$0xff]
  %v13 = vld [vmem:[%s0 + $0x10] sm:$0xff]
  %v14 = vld [vmem:[%s0 + $0x18] sm:$0xff]
  %v15 = vld [vmem:[%s1] sm:$0xff]
  %v16 = vld [vmem:[%s1 + $0x8] sm:$0xff]
  %v17 = vld [vmem:[%s1 + $0x10] sm:$0xff]
  %v18 = vld [vmem:[%s1 + $0x18] sm:$0xff]
  %v19 = vsub.f32 %v11, %v15
  %v20 = vsub.f32 %v12, %v16
  %v21 = vsub.f32 %v13, %v17
  %v22 = vsub.f32 %v14, %v18
  %v23 = vmul.f32 %v19, %v19
  %v24 = vmul.f32 %v20, %v20
  %v25 = vmul.f32 %v21, %v21
  %v26 = vmul.f32 %v22, %v22
  %v27 = vadd.f32 %v23, %v24
  %v28 = vadd.f32 %v25, %v26
  %v29 = vadd.f32 %v27, %v28
  %v30 = vrot.slane %v29, 4
  %v31 = vadd.f32 %v29, %v30
  %v32 = vrot.slane %v31, 2
  %v33 = vadd.f32 %v31, %v32
  %v34 = vrot.slane %v33, 1
  %v35 = vadd.f32 %v33, %v34
  %36 = vst [vmem:[%s2] sm:$0x1] %v35
  // Predicated region
  $region10: #{loss_function.1} parent=0 // pred_check
    _
  $region11: #{loss_function.1} parent=0 // pred_check_branch
    %38 = sbr.rel (0) target = $region13
  $region12: #{loss_function.1} parent=0 // pred_region
    _
  $region13: #{loss_function.1} parent=0 // pred_fallthru
    _
  // Predicated region
  $region14: #{loss_function.1} parent=0 // pred_check
    _
  $region15: #{loss_function.1} parent=0 // pred_check_branch
    %40 = sbr.rel (0) target = $region17
  $region16: #{loss_function.1} parent=0 // pred_region
    _
  $region17: #{loss_function.1} parent=0 // pred_fallthru
    _

</llo_original>
